<compile_context>
chip_gen: v7x
topology: tpu7x:2x2x1
jax: 0.10.0
libtpu: 0.0.40
codegen_flags: <defaults>
</compile_context>

<pallas_src>
import functools

import jax
import jax.numpy as jnp
from jax.experimental import pallas as pl
from jax.experimental.pallas import tpu as pltpu


# ----------------------------------------------------------------------------
# Parameter packing: store params once in the kernel-native, lane-dense layout.
# ----------------------------------------------------------------------------

def pack_conv_weight(w_hwio, W):
    """(3, 3, C, C) HWIO conv weight -> (3, W*C, W*C) block-banded matrices.

    M[kh][(w+kw-1)*C + ci, w*C + co] = w_hwio[kh, kw, ci, co].
    The zero band structure realizes the width-direction 'same' padding, so each
    conv layer becomes 3 matmuls of (H, W*C) x (W*C, W*C) on the MXU.
    """
    mats = []
    for kh in range(3):
        m = jnp.zeros((W * w_hwio.shape[2], W * w_hwio.shape[3]), w_hwio.dtype)
        for kw in range(3):
            shift = jnp.eye(W, k=1 - kw, dtype=w_hwio.dtype)  # S[iw, w] = 1 iff iw == w + kw - 1
            m = m + jnp.kron(shift, w_hwio[kh, kw])
        mats.append(m)
    return jnp.stack(mats)  # (3, WC, WC)


def pack_params(params, mem_shape):
    """Pre-pack raw (torch-layout) params into the kernel-native layout (done once)."""
    C, H, W = mem_shape
    WC = W * C
    return {
        # persistent-memory table in lane-dense (n_comps, H, W*C) layout
        "bias_flat": jnp.transpose(params["bias"], (0, 2, 3, 1)).reshape(-1, H, WC),
        # (3 layers, 3 kernel-rows, WC, WC) block-banded conv weights
        "m": jnp.stack([pack_conv_weight(params[f"w{i}"], W) for i in range(3)]),
        # conv biases tiled over width: (3, 1, WC), bvec[l, 0, w*C + co] = b_l[co]
        "bvec": jnp.stack([jnp.tile(params[f"b{i}"], W).reshape(1, WC) for i in range(3)]),
    }


# ----------------------------------------------------------------------------
# Fused kernel: gather slot -> 3x (conv3x3 + bias + ReLU) -> + x, one image/step.
# ----------------------------------------------------------------------------

def _fused_hypernet_kernel(H, WC, addrs_ref, bias_ref, x_ref, m_ref, bvec_ref,
                           o_ref, xp_ref):
    del addrs_ref  # consumed by the BlockSpec index maps (gather is a free DMA)

    zero_row = jnp.zeros((1, WC), jnp.float32)
    # In-kernel 'same' padding along H: keep one zero row above and below the image.
    # (Re-zeroed every step: scratch is not zero-initialized and on v7x a core may
    #  never see step 0, so do not gate this on program_id.)
    xp_ref[0:1, :] = zero_row
    xp_ref[H + 1:H + 2, :] = zero_row

    h = bias_ref[0]  # gathered memory slot, (H, WC) f32
    for layer in range(3):  # three fused ConvBlocks, intermediates stay on-chip
        xp_ref[1:H + 1, :] = h
        acc = jnp.dot(xp_ref[0:H, :], m_ref[layer, 0],
                      preferred_element_type=jnp.float32)
        acc += jnp.dot(xp_ref[1:H + 1, :], m_ref[layer, 1],
                       preferred_element_type=jnp.float32)
        acc += jnp.dot(xp_ref[2:H + 2, :], m_ref[layer, 2],
                       preferred_element_type=jnp.float32)
        h = jnp.maximum(acc + bvec_ref[layer], 0.0)  # conv bias + ReLU

    o_ref[0] = (x_ref[0] + h).astype(o_ref.dtype)  # fused residual add


def persistent_memory_forward(packed, x, comp_addrs):
    """x: [B, 3, C, H, W] f32; comp_addrs: [B, 3] int32 -> [B, 3, C, H, W]."""
    B, n, C, H, W = x.shape
    N, WC = B * n, W * C

    addrs = comp_addrs.reshape(N).astype(jnp.int32)
    # Module boundary is NCHW; convert x to the lane-dense (N, H, W*C) layout once.
    x_flat = jnp.transpose(x.reshape(N, C, H, W), (0, 2, 3, 1)).reshape(N, H, WC)

    grid_spec = pltpu.PrefetchScalarGridSpec(
        num_scalar_prefetch=1,
        grid=(N,),
        in_specs=[
            # persistent-memory slot, gathered via the prefetched addresses
            pl.BlockSpec((1, H, WC), lambda i, a: (a[i], 0, 0)),
            # residual input x for this image
            pl.BlockSpec((1, H, WC), lambda i, a: (i, 0, 0)),
            # packed conv weights, resident across all steps
            pl.BlockSpec((3, 3, WC, WC), lambda i, a: (0, 0, 0, 0)),
            # packed conv biases, resident
            pl.BlockSpec((3, 1, WC), lambda i, a: (0, 0, 0)),
        ],
        out_specs=pl.BlockSpec((1, H, WC), lambda i, a: (i, 0, 0)),
        scratch_shapes=[pltpu.VMEM((H + 2, WC), jnp.float32)],  # height-padded activation
    )

    out_flat = pl.pallas_call(
        functools.partial(_fused_hypernet_kernel, H, WC),
        out_shape=jax.ShapeDtypeStruct((N, H, WC), x.dtype),
        grid_spec=grid_spec,
        compiler_params=pltpu.CompilerParams(dimension_semantics=("parallel",)),
    )(addrs, packed["bias_flat"], x_flat, packed["m"], packed["bvec"])

    out = jnp.transpose(out_flat.reshape(N, H, W, C), (0, 3, 1, 2))
    return out.reshape(B, n, C, H, W)


# ----------------------------------------------------------------------------
# Raw-parameter init (torch analogue) and pure-JAX reference.
# ----------------------------------------------------------------------------

def init_params(key, n_comps, mem_shape):
    C, H, W = mem_shape
    keys = jax.random.split(key, 7)
    params = {"bias": jax.random.normal(keys[0], (n_comps, C, H, W), jnp.float32)}
    scale = 1.0 / jnp.sqrt(9.0 * C)
    for i in range(3):
        params[f"w{i}"] = scale * jax.random.normal(keys[1 + 2 * i], (3, 3, C, C), jnp.float32)  # HWIO
        params[f"b{i}"] = 0.1 * jax.random.normal(keys[2 + 2 * i], (C,), jnp.float32)
    return params


def persistent_memory_reference(params, x, comp_addrs):
    """Pure-JAX reference (lax conv, NCHW) for correctness checking."""
    b = params["bias"][comp_addrs]
    B, n, C, H, W = b.shape
    h = b.reshape(B * n, C, H, W)
    for i in range(3):
        h = jax.lax.conv_general_dilated(
            h, params[f"w{i}"], window_strides=(1, 1), padding="SAME",
            dimension_numbers=("NCHW", "HWIO", "NCHW"))
        h = h + params[f"b{i}"][None, :, None, None]
        h = jnp.maximum(h, 0.0)
    return x + h.reshape(B, n, C, H, W)


if __name__ == "__main__":
    B, n_comps = 2, 5
    mem_shape = (8, 16, 16)  # (C, H, W); W*C = 128 -> lane-dense activations
    C, H, W = mem_shape

    key = jax.random.PRNGKey(0)
    kp, kx, ka = jax.random.split(key, 3)
    raw_params = init_params(kp, n_comps, mem_shape)
    packed = pack_params(raw_params, mem_shape)

    x = jax.random.normal(kx, (B, 3, C, H, W), jnp.float32)
    comp_addrs = jax.random.randint(ka, (B, 3), 0, n_comps)

    out = jax.jit(persistent_memory_forward)(packed, x, comp_addrs)
    out = jax.block_until_ready(out)

    ref = persistent_memory_reference(raw_params, x, comp_addrs)
    assert out.shape == (B, 3, C, H, W)
    err = float(jnp.max(jnp.abs(out - ref)))
    assert jnp.allclose(out, ref, atol=1e-4, rtol=1e-4), err
    print("KERNEL_OK")
</pallas_src>

<mosaic_0001>
module attributes {stable_mosaic.version = 11 : i64} {
  func.func @_fused_hypernet_kernel(%arg0: i32, %arg1: memref<6xi32, #tpu.memory_space<smem>>, %arg2: memref<1x16x128xf32, #tpu.memory_space<vmem>>, %arg3: memref<1x16x128xf32, #tpu.memory_space<vmem>>, %arg4: memref<3x3x128x128xf32, #tpu.memory_space<vmem>>, %arg5: memref<3x1x128xf32, #tpu.memory_space<vmem>>, %arg6: memref<1x16x128xf32, #tpu.memory_space<vmem>>, %arg7: memref<18x128xf32, #tpu.memory_space<vmem>>) attributes {dimension_semantics = [#tpu.dimension_semantics<parallel>], iteration_bounds = array<i64: 6>, scalar_prefetch = 1 : i64, scratch_operands = 1 : i64, tpu.core_type = #tpu.core_type<tc>, window_params = [{transform_indices = @transform_0, window_bounds = array<i64: 1, 16, 128>}, {transform_indices = @transform_1, window_bounds = array<i64: 1, 16, 128>}, {pipeline_mode = #tpu.pipeline_mode<synchronous>, transform_indices = @transform_2, window_bounds = array<i64: 3, 3, 128, 128>}, {pipeline_mode = #tpu.pipeline_mode<synchronous>, transform_indices = @transform_3, window_bounds = array<i64: 3, 1, 128>}, {transform_indices = @transform_4, window_bounds = array<i64: 1, 16, 128>}]} {
    %cst = arith.constant 0.000000e+00 : f32
    %0 = vector.broadcast %cst : f32 to vector<1x128xf32>
    %c0 = arith.constant 0 : index
    %c0_0 = arith.constant 0 : index
    %1 = vector.load %arg7[%c0, %c0_0] : memref<18x128xf32, #tpu.memory_space<vmem>>, vector<1x128xf32>
    tpu.vector_store %arg7[%c0, %c0_0], %0 {strides = array<i32>} : memref<18x128xf32, #tpu.memory_space<vmem>>, vector<1x128xf32>,
    %c17 = arith.constant 17 : index
    %c0_1 = arith.constant 0 : index
    %2 = vector.load %arg7[%c17, %c0_1] : memref<18x128xf32, #tpu.memory_space<vmem>>, vector<1x128xf32>
    tpu.vector_store %arg7[%c17, %c0_1], %0 {strides = array<i32>} : memref<18x128xf32, #tpu.memory_space<vmem>>, vector<1x128xf32>,
    %c0_2 = arith.constant 0 : index
    %c0_3 = arith.constant 0 : index
    %c0_4 = arith.constant 0 : index
    %3 = vector.load %arg2[%c0_2, %c0_3, %c0_4] : memref<1x16x128xf32, #tpu.memory_space<vmem>>, vector<1x16x128xf32>
    %4 = vector.shape_cast %3 : vector<1x16x128xf32> to vector<16x128xf32>
    %c1 = arith.constant 1 : index
    %c0_5 = arith.constant 0 : index
    %5 = vector.load %arg7[%c1, %c0_5] : memref<18x128xf32, #tpu.memory_space<vmem>>, vector<16x128xf32>
    tpu.vector_store %arg7[%c1, %c0_5], %4 {strides = array<i32>} : memref<18x128xf32, #tpu.memory_space<vmem>>, vector<16x128xf32>,
    %c0_6 = arith.constant 0 : index
    %c0_7 = arith.constant 0 : index
    %6 = vector.load %arg7[%c0_6, %c0_7] : memref<18x128xf32, #tpu.memory_space<vmem>>, vector<16x128xf32>
    %c0_8 = arith.constant 0 : index
    %c0_9 = arith.constant 0 : index
    %c0_10 = arith.constant 0 : index
    %c0_11 = arith.constant 0 : index
    %7 = vector.load %arg4[%c0_8, %c0_9, %c0_10, %c0_11] : memref<3x3x128x128xf32, #tpu.memory_space<vmem>>, vector<1x1x128x128xf32>
    %8 = vector.shape_cast %7 : vector<1x1x128x128xf32> to vector<128x128xf32>
    %cst_12 = arith.constant dense<0.000000e+00> : vector<16x128xf32>
    %9 = tpu.matmul %6, %8, %cst_12 {dimension_numbers = #tpu.dot_dimension_numbers<[1], [0], [0], [1], [0, 0, 1, 1], [], []>} : vector<16x128xf32>, vector<128x128xf32>, vector<16x128xf32> -> vector<16x128xf32>
    %c1_13 = arith.constant 1 : index
    %c0_14 = arith.constant 0 : index
    %10 = vector.load %arg7[%c1_13, %c0_14] : memref<18x128xf32, #tpu.memory_space<vmem>>, vector<16x128xf32>
    %c0_15 = arith.constant 0 : index
    %c1_16 = arith.constant 1 : index
    %c0_17 = arith.constant 0 : index
    %c0_18 = arith.constant 0 : index
    %11 = vector.load %arg4[%c0_15, %c1_16, %c0_17, %c0_18] : memref<3x3x128x128xf32, #tpu.memory_space<vmem>>, vector<1x1x128x128xf32>
    %12 = vector.shape_cast %11 : vector<1x1x128x128xf32> to vector<128x128xf32>
    %cst_19 = arith.constant dense<0.000000e+00> : vector<16x128xf32>
    %13 = tpu.matmul %10, %12, %cst_19 {dimension_numbers = #tpu.dot_dimension_numbers<[1], [0], [0], [1], [0, 0, 1, 1], [], []>} : vector<16x128xf32>, vector<128x128xf32>, vector<16x128xf32> -> vector<16x128xf32>
    %14 = arith.addf %9, %13 : vector<16x128xf32>
    %c2 = arith.constant 2 : index
    %c0_20 = arith.constant 0 : index
    %15 = vector.load %arg7[%c2, %c0_20] : memref<18x128xf32, #tpu.memory_space<vmem>>, vector<16x128xf32>
    %c0_21 = arith.constant 0 : index
    %c2_22 = arith.constant 2 : index
    %c0_23 = arith.constant 0 : index
    %c0_24 = arith.constant 0 : index
    %16 = vector.load %arg4[%c0_21, %c2_22, %c0_23, %c0_24] : memref<3x3x128x128xf32, #tpu.memory_space<vmem>>, vector<1x1x128x128xf32>
    %17 = vector.shape_cast %16 : vector<1x1x128x128xf32> to vector<128x128xf32>
    %cst_25 = arith.constant dense<0.000000e+00> : vector<16x128xf32>
    %18 = tpu.matmul %15, %17, %cst_25 {dimension_numbers = #tpu.dot_dimension_numbers<[1], [0], [0], [1], [0, 0, 1, 1], [], []>} : vector<16x128xf32>, vector<128x128xf32>, vector<16x128xf32> -> vector<16x128xf32>
    %19 = arith.addf %14, %18 : vector<16x128xf32>
    %c0_26 = arith.constant 0 : index
    %c0_27 = arith.constant 0 : index
    %c0_28 = arith.constant 0 : index
    %20 = vector.load %arg5[%c0_26, %c0_27, %c0_28] : memref<3x1x128xf32, #tpu.memory_space<vmem>>, vector<1x1x128xf32>
    %21 = vector.shape_cast %20 : vector<1x1x128xf32> to vector<1x128xf32>
    %22 = vector.broadcast %21 : vector<1x128xf32> to vector<16x128xf32>
    %23 = arith.addf %19, %22 : vector<16x128xf32>
    %cst_29 = arith.constant 0.000000e+00 : f32
    %24 = vector.broadcast %cst_29 : f32 to vector<16x128xf32>
    %25 = arith.maximumf %23, %24 : vector<16x128xf32>
    %c1_30 = arith.constant 1 : index
    %c0_31 = arith.constant 0 : index
    %26 = vector.load %arg7[%c1_30, %c0_31] : memref<18x128xf32, #tpu.memory_space<vmem>>, vector<16x128xf32>
    tpu.vector_store %arg7[%c1_30, %c0_31], %25 {strides = array<i32>} : memref<18x128xf32, #tpu.memory_space<vmem>>, vector<16x128xf32>,
    %c0_32 = arith.constant 0 : index
    %c0_33 = arith.constant 0 : index
    %27 = vector.load %arg7[%c0_32, %c0_33] : memref<18x128xf32, #tpu.memory_space<vmem>>, vector<16x128xf32>
    %c1_34 = arith.constant 1 : index
    %c0_35 = arith.constant 0 : index
    %c0_36 = arith.constant 0 : index
    %c0_37 = arith.constant 0 : index
    %28 = vector.load %arg4[%c1_34, %c0_35, %c0_36, %c0_37] : memref<3x3x128x128xf32, #tpu.memory_space<vmem>>, vector<1x1x128x128xf32>
    %29 = vector.shape_cast %28 : vector<1x1x128x128xf32> to vector<128x128xf32>
    %cst_38 = arith.constant dense<0.000000e+00> : vector<16x128xf32>
    %30 = tpu.matmul %27, %29, %cst_38 {dimension_numbers = #tpu.dot_dimension_numbers<[1], [0], [0], [1], [0, 0, 1, 1], [], []>} : vector<16x128xf32>, vector<128x128xf32>, vector<16x128xf32> -> vector<16x128xf32>
    %c1_39 = arith.constant 1 : index
    %c0_40 = arith.constant 0 : index
    %31 = vector.load %arg7[%c1_39, %c0_40] : memref<18x128xf32, #tpu.memory_space<vmem>>, vector<16x128xf32>
    %c1_41 = arith.constant 1 : index
    %c1_42 = arith.constant 1 : index
    %c0_43 = arith.constant 0 : index
    %c0_44 = arith.constant 0 : index
    %32 = vector.load %arg4[%c1_41, %c1_42, %c0_43, %c0_44] : memref<3x3x128x128xf32, #tpu.memory_space<vmem>>, vector<1x1x128x128xf32>
    %33 = vector.shape_cast %32 : vector<1x1x128x128xf32> to vector<128x128xf32>
    %cst_45 = arith.constant dense<0.000000e+00> : vector<16x128xf32>
    %34 = tpu.matmul %31, %33, %cst_45 {dimension_numbers = #tpu.dot_dimension_numbers<[1], [0], [0], [1], [0, 0, 1, 1], [], []>} : vector<16x128xf32>, vector<128x128xf32>, vector<16x128xf32> -> vector<16x128xf32>
    %35 = arith.addf %30, %34 : vector<16x128xf32>
    %c2_46 = arith.constant 2 : index
    %c0_47 = arith.constant 0 : index
    %36 = vector.load %arg7[%c2_46, %c0_47] : memref<18x128xf32, #tpu.memory_space<vmem>>, vector<16x128xf32>
    %c1_48 = arith.constant 1 : index
    %c2_49 = arith.constant 2 : index
    %c0_50 = arith.constant 0 : index
    %c0_51 = arith.constant 0 : index
    %37 = vector.load %arg4[%c1_48, %c2_49, %c0_50, %c0_51] : memref<3x3x128x128xf32, #tpu.memory_space<vmem>>, vector<1x1x128x128xf32>
    %38 = vector.shape_cast %37 : vector<1x1x128x128xf32> to vector<128x128xf32>
    %cst_52 = arith.constant dense<0.000000e+00> : vector<16x128xf32>
    %39 = tpu.matmul %36, %38, %cst_52 {dimension_numbers = #tpu.dot_dimension_numbers<[1], [0], [0], [1], [0, 0, 1, 1], [], []>} : vector<16x128xf32>, vector<128x128xf32>, vector<16x128xf32> -> vector<16x128xf32>
    %40 = arith.addf %35, %39 : vector<16x128xf32>
    %c1_53 = arith.constant 1 : index
    %c0_54 = arith.constant 0 : index
    %c0_55 = arith.constant 0 : index
    %41 = vector.load %arg5[%c1_53, %c0_54, %c0_55] : memref<3x1x128xf32, #tpu.memory_space<vmem>>, vector<1x1x128xf32>
    %42 = vector.shape_cast %41 : vector<1x1x128xf32> to vector<1x128xf32>
    %43 = vector.broadcast %42 : vector<1x128xf32> to vector<16x128xf32>
    %44 = arith.addf %40, %43 : vector<16x128xf32>
    %cst_56 = arith.constant 0.000000e+00 : f32
    %45 = vector.broadcast %cst_56 : f32 to vector<16x128xf32>
    %46 = arith.maximumf %44, %45 : vector<16x128xf32>
    %c1_57 = arith.constant 1 : index
    %c0_58 = arith.constant 0 : index
    %47 = vector.load %arg7[%c1_57, %c0_58] : memref<18x128xf32, #tpu.memory_space<vmem>>, vector<16x128xf32>
    tpu.vector_store %arg7[%c1_57, %c0_58], %46 {strides = array<i32>} : memref<18x128xf32, #tpu.memory_space<vmem>>, vector<16x128xf32>,
    %c0_59 = arith.constant 0 : index
    %c0_60 = arith.constant 0 : index
    %48 = vector.load %arg7[%c0_59, %c0_60] : memref<18x128xf32, #tpu.memory_space<vmem>>, vector<16x128xf32>
    %c2_61 = arith.constant 2 : index
    %c0_62 = arith.constant 0 : index
    %c0_63 = arith.constant 0 : index
    %c0_64 = arith.constant 0 : index
    %49 = vector.load %arg4[%c2_61, %c0_62, %c0_63, %c0_64] : memref<3x3x128x128xf32, #tpu.memory_space<vmem>>, vector<1x1x128x128xf32>
    %50 = vector.shape_cast %49 : vector<1x1x128x128xf32> to vector<128x128xf32>
    %cst_65 = arith.constant dense<0.000000e+00> : vector<16x128xf32>
    %51 = tpu.matmul %48, %50, %cst_65 {dimension_numbers = #tpu.dot_dimension_numbers<[1], [0], [0], [1], [0, 0, 1, 1], [], []>} : vector<16x128xf32>, vector<128x128xf32>, vector<16x128xf32> -> vector<16x128xf32>
    %c1_66 = arith.constant 1 : index
    %c0_67 = arith.constant 0 : index
    %52 = vector.load %arg7[%c1_66, %c0_67] : memref<18x128xf32, #tpu.memory_space<vmem>>, vector<16x128xf32>
    %c2_68 = arith.constant 2 : index
    %c1_69 = arith.constant 1 : index
    %c0_70 = arith.constant 0 : index
    %c0_71 = arith.constant 0 : index
    %53 = vector.load %arg4[%c2_68, %c1_69, %c0_70, %c0_71] : memref<3x3x128x128xf32, #tpu.memory_space<vmem>>, vector<1x1x128x128xf32>
    %54 = vector.shape_cast %53 : vector<1x1x128x128xf32> to vector<128x128xf32>
    %cst_72 = arith.constant dense<0.000000e+00> : vector<16x128xf32>
    %55 = tpu.matmul %52, %54, %cst_72 {dimension_numbers = #tpu.dot_dimension_numbers<[1], [0], [0], [1], [0, 0, 1, 1], [], []>} : vector<16x128xf32>, vector<128x128xf32>, vector<16x128xf32> -> vector<16x128xf32>
    %56 = arith.addf %51, %55 : vector<16x128xf32>
    %c2_73 = arith.constant 2 : index
    %c0_74 = arith.constant 0 : index
    %57 = vector.load %arg7[%c2_73, %c0_74] : memref<18x128xf32, #tpu.memory_space<vmem>>, vector<16x128xf32>
    %c2_75 = arith.constant 2 : index
    %c2_76 = arith.constant 2 : index
    %c0_77 = arith.constant 0 : index
    %c0_78 = arith.constant 0 : index
    %58 = vector.load %arg4[%c2_75, %c2_76, %c0_77, %c0_78] : memref<3x3x128x128xf32, #tpu.memory_space<vmem>>, vector<1x1x128x128xf32>
    %59 = vector.shape_cast %58 : vector<1x1x128x128xf32> to vector<128x128xf32>
    %cst_79 = arith.constant dense<0.000000e+00> : vector<16x128xf32>
    %60 = tpu.matmul %57, %59, %cst_79 {dimension_numbers = #tpu.dot_dimension_numbers<[1], [0], [0], [1], [0, 0, 1, 1], [], []>} : vector<16x128xf32>, vector<128x128xf32>, vector<16x128xf32> -> vector<16x128xf32>
    %61 = arith.addf %56, %60 : vector<16x128xf32>
    %c2_80 = arith.constant 2 : index
    %c0_81 = arith.constant 0 : index
    %c0_82 = arith.constant 0 : index
    %62 = vector.load %arg5[%c2_80, %c0_81, %c0_82] : memref<3x1x128xf32, #tpu.memory_space<vmem>>, vector<1x1x128xf32>
    %63 = vector.shape_cast %62 : vector<1x1x128xf32> to vector<1x128xf32>
    %64 = vector.broadcast %63 : vector<1x128xf32> to vector<16x128xf32>
    %65 = arith.addf %61, %64 : vector<16x128xf32>
    %cst_83 = arith.constant 0.000000e+00 : f32
    %66 = vector.broadcast %cst_83 : f32 to vector<16x128xf32>
    %67 = arith.maximumf %65, %66 : vector<16x128xf32>
    %c0_84 = arith.constant 0 : index
    %c0_85 = arith.constant 0 : index
    %c0_86 = arith.constant 0 : index
    %68 = vector.load %arg3[%c0_84, %c0_85, %c0_86] : memref<1x16x128xf32, #tpu.memory_space<vmem>>, vector<1x16x128xf32>
    %69 = vector.shape_cast %68 : vector<1x16x128xf32> to vector<16x128xf32>
    %70 = arith.addf %69, %67 : vector<16x128xf32>
    %c0_87 = arith.constant 0 : index
    %c0_88 = arith.constant 0 : index
    %c0_89 = arith.constant 0 : index
    %71 = vector.load %arg6[%c0_87, %c0_88, %c0_89] : memref<1x16x128xf32, #tpu.memory_space<vmem>>, vector<1x16x128xf32>
    %72 = vector.shape_cast %71 : vector<1x16x128xf32> to vector<16x128xf32>
    %73 = vector.shape_cast %70 : vector<16x128xf32> to vector<1x16x128xf32>
    tpu.vector_store %arg6[%c0_87, %c0_88, %c0_89], %73 {strides = array<i32>} : memref<1x16x128xf32, #tpu.memory_space<vmem>>, vector<1x16x128xf32>,
    return
  }
  func.func @transform_0(%arg0: i32, %arg1: memref<6xi32, #tpu.memory_space<smem>>) -> (i32, i32, i32) {
    %0 = arith.index_cast %arg0 : i32 to index
    %1 = memref.load %arg1[%0] : memref<6xi32, #tpu.memory_space<smem>>
    %c0_i32 = arith.constant 0 : i32
    %c0_i32_0 = arith.constant 0 : i32
    %c0_i32_1 = arith.constant 0 : i32
    return %1, %c0_i32, %c0_i32_0 : i32, i32, i32
  }
  func.func @transform_1(%arg0: i32, %arg1: memref<6xi32, #tpu.memory_space<smem>>) -> (i32, i32, i32) {
    %c0_i32 = arith.constant 0 : i32
    %c0_i32_0 = arith.constant 0 : i32
    %c0_i32_1 = arith.constant 0 : i32
    return %arg0, %c0_i32, %c0_i32_0 : i32, i32, i32
  }
  func.func @transform_2(%arg0: i32, %arg1: memref<6xi32, #tpu.memory_space<smem>>) -> (i32, i32, i32, i32) {
    %c0_i32 = arith.constant 0 : i32
    %c0_i32_0 = arith.constant 0 : i32
    %c0_i32_1 = arith.constant 0 : i32
    %c0_i32_2 = arith.constant 0 : i32
    %c0_i32_3 = arith.constant 0 : i32
    return %c0_i32, %c0_i32_0, %c0_i32_1, %c0_i32_2 : i32, i32, i32, i32
  }
  func.func @transform_3(%arg0: i32, %arg1: memref<6xi32, #tpu.memory_space<smem>>) -> (i32, i32, i32) {
    %c0_i32 = arith.constant 0 : i32
    %c0_i32_0 = arith.constant 0 : i32
    %c0_i32_1 = arith.constant 0 : i32
    %c0_i32_2 = arith.constant 0 : i32
    return %c0_i32, %c0_i32_0, %c0_i32_1 : i32, i32, i32
  }
  func.func @transform_4(%arg0: i32, %arg1: memref<6xi32, #tpu.memory_space<smem>>) -> (i32, i32, i32) {
    %c0_i32 = arith.constant 0 : i32
    %c0_i32_0 = arith.constant 0 : i32
    %c0_i32_1 = arith.constant 0 : i32
    return %arg0, %c0_i32, %c0_i32_0 : i32, i32, i32
  }
}

</mosaic_0001>

<llo_original>
// kernel: persistent_memory_forward.1
$region0: #{persistent_memory_forward.1}
  #allocation0 [shape = 'u32[]', space=smem, size = 0x4, offset = 0x4, fixed_abs, tag = 'smem constant byte address 0x4 - core index']
  #allocation1 [shape = 'u32[144,128]{1,0:T(1,128)}', space=vmem, size = 0x12000, scoped, tag = 'internal scratch']
  #allocation2 [shape = 'f32[18,128]{1,0:T(8,128)}', space=vmem, size = 0x3000, scoped, tag = 'scratch operand']
  #allocation3 [shape = 's32[1]{0}', space=sflag, size = 0x4, scoped, tag = 'scoped memory for persistent_memory_forward.1']
  #allocation4 [shape = 'u8[512]{0}', space=smem, size = 0x200, scoped, tag = 'prefetched SMEM operand 0']
  %s0 = inlined_call_operand.vmem [shape: s32[6], index: 0, kind: input, shape index: {}]
  %s1 = inlined_call_operand.vmem [shape: f32[5,16,128], index: 1, kind: input, shape index: {}]
  %s2 = inlined_call_operand.vmem [shape: f32[6,16,128], index: 2, kind: input, shape index: {}]
  %s3 = inlined_call_operand.vmem [shape: f32[3,3,128,128], index: 3, kind: input, shape index: {}]
  %s4 = inlined_call_operand.vmem [shape: f32[3,1,128], index: 4, kind: input, shape index: {}]
  %s5 = inlined_call_operand.vmem [shape: f32[6,16,128], index: 5, kind: output, shape index: {}]
  %s6 = sld [smem:[#allocation0]]
  $region49: #{persistent_memory_forward.1} parent=0
    _
  %s8 = ssub.s32 1, %s6
  %s9 = scalar_select 0, %s8, %s6
  %s10 = sshll.u32 %s0, 4
  %s11 = int_to_ptr.vmem [resolvable:$true] %s10
  %13 = dma.vmem_to_smem %s11, 16, [#allocation4], [#allocation3]
  %14 = dma.done [#allocation3], 16
  %15 = sfence
  loop: start=0, step=1, limit=8
  $region2: #{persistent_memory_forward.1} parent=0 // loop_pre_header
    _
  $region3: #{persistent_memory_forward.1} parent=0 // loop_header
    %s17 = sphi 0, %s21
    %p18 = scmp.ge.s32.totalorder %s17, 8
    %s29 = sphi 0, %s31
    %s32 = sphi 0, %s29
    %s33 = sphi 0, %s32
    %s49 = sphi 0, %s33
    %s55 = sphi 0, %s57
    %s58 = sphi 0, %s55
    %s59 = sphi 0, %s58
    %s75 = sphi 0, %s59
    %s79 = sphi 0, %s79
    %s81 = sphi 0, %s79
    %s82 = sphi 0, %s81
    %s96 = sphi 0, %s82
    %s100 = sphi 0, %s100
    %s102 = sphi 0, %s100
    %s103 = sphi 0, %s102
    %s117 = sphi 0, %s103
    %s123 = sphi 0, %s125
    %s126 = sphi 0, %s123
    %s127 = sphi 0, %s126
    %s143 = sphi 0, %s127
  $region4: #{persistent_memory_forward.1} parent=0 // loop_header_branch
    %20 = sbr.rel (%p18) target = $region8
  $region5: #{persistent_memory_forward.1} parent=0 // loop_body
    %s22 = ssub.s32 %s17, 1
    %s23 = ssub.s32 %s17, 2
    %s24 = sadd.s32 %s17, 1
    %s25 = sld [smem:[#allocation4 + %s17]]
    %s26 = sld [smem:[#allocation4 + %s24]]
    %s27 = ssub.s32 %s25, %s26
    %p28 = scmp.eq.s32.totalorder %s27, 0
    %s30 = sadd.s32 %s29, 1
    %s31 = scalar_select %p28, %s29, %s30
    %p34 = pneg %p28
    %p35 = scmp.eq.s32.totalorder %s17, 5
    %p36 = por %p34, %p35
    %p37 = scmp.ne.s32.totalorder %s29, %s32
    %p38 = scmp.eq.s32.totalorder %s17, 0
    %p39 = por %p37, %p38
    %p40 = scmp.ne.s32.totalorder %s29, %s32
    %p41 = scmp.eq.s32.totalorder %s22, 5
    %p42 = por %p40, %p41
    %p43 = scmp.ne.s32.totalorder %s32, %s33
    %p44 = scmp.eq.s32.totalorder %s22, 0
    %p45 = por %p43, %p44
    %p46 = scmp.ne.s32.totalorder %s32, %s33
    %p47 = scmp.eq.s32.totalorder %s23, 5
    %p48 = por %p46, %p47
    %p50 = scmp.ne.s32.totalorder %s33, %s49
    %p51 = scmp.eq.s32.totalorder %s23, 0
    %p52 = por %p50, %p51
    %s53 = ssub.s32 %s17, %s24
    %p54 = scmp.eq.s32.totalorder %s53, 0
    %s56 = sadd.s32 %s55, 1
    %s57 = scalar_select %p54, %s55, %s56
    %p60 = pneg %p54
    %p61 = scmp.eq.s32.totalorder %s17, 5
    %p62 = por %p60, %p61
    %p63 = scmp.ne.s32.totalorder %s55, %s58
    %p64 = scmp.eq.s32.totalorder %s17, 0
    %p65 = por %p63, %p64
    %p66 = scmp.ne.s32.totalorder %s55, %s58
    %p67 = scmp.eq.s32.totalorder %s22, 5
    %p68 = por %p66, %p67
    %p69 = scmp.ne.s32.totalorder %s58, %s59
    %p70 = scmp.eq.s32.totalorder %s22, 0
    %p71 = por %p69, %p70
    %p72 = scmp.ne.s32.totalorder %s58, %s59
    %p73 = scmp.eq.s32.totalorder %s23, 5
    %p74 = por %p72, %p73
    %p76 = scmp.ne.s32.totalorder %s59, %s75
    %p77 = scmp.eq.s32.totalorder %s23, 0
    %p78 = por %p76, %p77
    %s80 = sadd.s32 %s79, 1
    %p83 = scmp.eq.s32.totalorder %s17, 5
    %p84 = scmp.ne.s32.totalorder %s79, %s81
    %p85 = scmp.eq.s32.totalorder %s17, 0
    %p86 = por %p84, %p85
    %p87 = scmp.ne.s32.totalorder %s79, %s81
    %p88 = scmp.eq.s32.totalorder %s22, 5
    %p89 = por %p87, %p88
    %p90 = scmp.ne.s32.totalorder %s81, %s82
    %p91 = scmp.eq.s32.totalorder %s22, 0
    %p92 = por %p90, %p91
    %p93 = scmp.ne.s32.totalorder %s81, %s82
    %p94 = scmp.eq.s32.totalorder %s23, 5
    %p95 = por %p93, %p94
    %p97 = scmp.ne.s32.totalorder %s82, %s96
    %p98 = scmp.eq.s32.totalorder %s23, 0
    %p99 = por %p97, %p98
    %s101 = sadd.s32 %s100, 1
    %p104 = scmp.eq.s32.totalorder %s17, 5
    %p105 = scmp.ne.s32.totalorder %s100, %s102
    %p106 = scmp.eq.s32.totalorder %s17, 0
    %p107 = por %p105, %p106
    %p108 = scmp.ne.s32.totalorder %s100, %s102
    %p109 = scmp.eq.s32.totalorder %s22, 5
    %p110 = por %p108, %p109
    %p111 = scmp.ne.s32.totalorder %s102, %s103
    %p112 = scmp.eq.s32.totalorder %s22, 0
    %p113 = por %p111, %p112
    %p114 = scmp.ne.s32.totalorder %s102, %s103
    %p115 = scmp.eq.s32.totalorder %s23, 5
    %p116 = por %p114, %p115
    %p118 = scmp.ne.s32.totalorder %s103, %s117
    %p119 = scmp.eq.s32.totalorder %s23, 0
    %p120 = por %p118, %p119
    %s121 = ssub.s32 %s17, %s24
    %p122 = scmp.eq.s32.totalorder %s121, 0
    %s124 = sadd.s32 %s123, 1
    %s125 = scalar_select %p122, %s123, %s124
    %p128 = pneg %p122
    %p129 = scmp.eq.s32.totalorder %s17, 5
    %p130 = por %p128, %p129
    %p131 = scmp.ne.s32.totalorder %s123, %s126
    %p132 = scmp.eq.s32.totalorder %s17, 0
    %p133 = por %p131, %p132
    %p134 = scmp.ne.s32.totalorder %s123, %s126
    %p135 = scmp.eq.s32.totalorder %s22, 5
    %p136 = por %p134, %p135
    %p137 = scmp.ne.s32.totalorder %s126, %s127
    %p138 = scmp.eq.s32.totalorder %s22, 0
    %p139 = por %p137, %p138
    %p140 = scmp.ne.s32.totalorder %s126, %s127
    %p141 = scmp.eq.s32.totalorder %s23, 5
    %p142 = por %p140, %p141
    %p144 = scmp.ne.s32.totalorder %s127, %s143
    %p145 = scmp.eq.s32.totalorder %s23, 0
    %p146 = por %p144, %p145
    %p147 = scmp.le.s32.totalorder 1, %s17
    %p148 = scmp.lt.s32.totalorder %s17, 7
    %p149 = pnand %p147, %p148
    %p150 = pneg %p149
    // Predicated region
    $region9: #{persistent_memory_forward.1} parent=5 // pred_check
      _
    $region10: #{persistent_memory_forward.1} parent=5 // pred_check_branch
      %152 = sbr.rel (%p149) target = $region12
    $region11: #{persistent_memory_forward.1} parent=5 // pred_region
      %s153 = ssub.s32 %s17, 1
      // Predicated region
      $region13: #{persistent_memory_forward.1} parent=11 // pred_check
        %p154 = pneg %p92
      $region14: #{persistent_memory_forward.1} parent=11 // pred_check_branch
        %156 = sbr.rel (%p154) target = $region16
      $region15: #{persistent_memory_forward.1} parent=11 // pred_region
        _
      $region16: #{persistent_memory_forward.1} parent=11 // pred_fallthru
        _
      // Predicated region
      $region17: #{persistent_memory_forward.1} parent=11 // pred_check
        %p157 = pneg %p113
      $region18: #{persistent_memory_forward.1} parent=11 // pred_check_branch
        %159 = sbr.rel (%p157) target = $region20
      $region19: #{persistent_memory_forward.1} parent=11 // pred_region
        _
      $region20: #{persistent_memory_forward.1} parent=11 // pred_fallthru
        _
    $region12: #{persistent_memory_forward.1} parent=5 // pred_fallthru
      _
    %p160 = scmp.lt.s32.totalorder %s17, 6
    // Predicated region
    $region21: #{persistent_memory_forward.1} parent=5 // pred_check
      %p161 = pneg %p160
    $region22: #{persistent_memory_forward.1} parent=5 // pred_check_branch
      %163 = sbr.rel (%p161) target = $region24
    $region23: #{persistent_memory_forward.1} parent=5 // pred_region
      // Predicated region
      $region25: #{persistent_memory_forward.1} parent=23 // pred_check
        %p164 = pneg %p39
      $region26: #{persistent_memory_forward.1} parent=23 // pred_check_branch
        %166 = sbr.rel (%p164) target = $region28
      $region27: #{persistent_memory_forward.1} parent=23 // pred_region
        %s167 = sld [smem:[#allocation4 + %s17]]
        %p168 = scmp.lt.s32.totalorder %s167, 4
        %s169 = scalar_select %p168, %s167, 4
        %s170 = smul.addr %s169, 2
        %s171 = smul.addr %s170, 8
        %s172 = scalar_lea.vmem %s1, %s171
        %s173 = sld [smem:[#allocation4 + %s17]]
      $region28: #{persistent_memory_forward.1} parent=23 // pred_fallthru
        _
      // Predicated region
      $region29: #{persistent_memory_forward.1} parent=23 // pred_check
        %p174 = pneg %p65
      $region30: #{persistent_memory_forward.1} parent=23 // pred_check_branch
        %176 = sbr.rel (%p174) target = $region32
      $region31: #{persistent_memory_forward.1} parent=23 // pred_region
        %p177 = scmp.lt.s32.totalorder %s17, 5
        %s178 = scalar_select %p177, %s17, 5
        %s179 = smul.addr %s178, 2
        %s180 = smul.addr %s179, 8
        %s181 = scalar_lea.vmem %s2, %s180
      $region32: #{persistent_memory_forward.1} parent=23 // pred_fallthru
        _
    $region24: #{persistent_memory_forward.1} parent=5 // pred_fallthru
      _
    %p182 = scmp.le.s32.totalorder 1, %s17
    %p183 = scmp.lt.s32.totalorder %s17, 7
    %p184 = pnand %p182, %p183
    %p185 = pneg %p184
    // Predicated region
    $region33: #{persistent_memory_forward.1} parent=5 // pred_check
      _
    $region34: #{persistent_memory_forward.1} parent=5 // pred_check_branch
      %187 = sbr.rel (%p184) target = $region36
    $region35: #{persistent_memory_forward.1} parent=5 // pred_region
      %s188 = ssub.s32 %s17, 1
      %s189 = sld [smem:[#allocation4 + %s22]]
      %p190 = scmp.lt.s32.totalorder %s189, 4
      %s191 = scalar_select %p190, %s189, 4
      %s192 = smul.addr %s191, 2
      %s193 = smul.addr %s192, 8
      %s194 = scalar_lea.vmem %s1, %s193
      %p195 = pneg %p45
      %p196 = pneg %p42
      %p197 = scmp.lt.s32.totalorder %s22, 5
      %s198 = scalar_select %p197, %s22, 5
      %s199 = smul.addr %s198, 2
      %s200 = smul.addr %s199, 8
      %s201 = scalar_lea.vmem %s2, %s200
      %p202 = pneg %p71
      %p203 = pneg %p68
      %p204 = pneg %p92
      %p205 = pneg %p89
      %p206 = pneg %p113
      %p207 = pneg %p110
      %p208 = pneg %p139
      %p209 = pneg %p136
      %p210 = scmp.lt.s32.totalorder %s22, 5
      %s211 = scalar_select %p210, %s22, 5
      %s212 = smul.addr %s211, 2
      %s213 = smul.addr %s212, 8
      %s214 = scalar_lea.vmem %s5, %s213
      %s215 = sld [smem:[#allocation4 + %s22]]
      %p216 = scmp.lt.s32.totalorder %s215, 4
      %s217 = scalar_select %p216, %s215, 4
      %s218 = smul.addr %s217, 2
      %s219 = smul.addr %s218, 8
      %s220 = scalar_lea.vmem %s1, %s219
      %s221 = sld [smem:[#allocation4 + %s22]]
      %p222 = scmp.lt.s32.totalorder %s22, 5
      %s223 = scalar_select %p222, %s22, 5
      %s224 = smul.addr %s223, 2
      %s225 = smul.addr %s224, 8
      %s226 = scalar_lea.vmem %s2, %s225
      %p227 = scmp.lt.s32.totalorder %s22, 5
      %s228 = scalar_select %p227, %s22, 5
      %s229 = smul.addr %s228, 2
      %s230 = smul.addr %s229, 8
      %s231 = scalar_lea.vmem %s5, %s230
      %232 = vst [vmem:[#allocation2] sm:$0x1] 0.0
      %233 = vst [vmem:[#allocation2 + $0x11] sm:$0x1] 0.0
      %v234 = vld [vmem:[%s220] sm:$0xff]
      %v235 = vld [vmem:[%s220 + $0x8] sm:$0xff]
      %236 = vst [vmem:[#allocation2 + $0x1] sm:$0xff] %v234
      %237 = vst [vmem:[#allocation2 + $0x9] sm:$0xff] %v235
      %v238 = vld [vmem:[#allocation2] sm:$0xff]
      %v239 = vld [vmem:[#allocation2 + $0x8] sm:$0xff]
      %v240 = vld [vmem:[%s3] sm:$0xff]
      %v241 = vld [vmem:[%s3 + $0x8] sm:$0xff]
      %v242 = vld [vmem:[%s3 + $0x10] sm:$0xff]
      %v243 = vld [vmem:[%s3 + $0x18] sm:$0xff]
      %v244 = vld [vmem:[%s3 + $0x20] sm:$0xff]
      %v245 = vld [vmem:[%s3 + $0x28] sm:$0xff]
      %v246 = vld [vmem:[%s3 + $0x30] sm:$0xff]
      %v247 = vld [vmem:[%s3 + $0x38] sm:$0xff]
      %v248 = vld [vmem:[%s3 + $0x40] sm:$0xff]
      %v249 = vld [vmem:[%s3 + $0x48] sm:$0xff]
      %v250 = vld [vmem:[%s3 + $0x50] sm:$0xff]
      %v251 = vld [vmem:[%s3 + $0x58] sm:$0xff]
      %v252 = vld [vmem:[%s3 + $0x60] sm:$0xff]
      %v253 = vld [vmem:[%s3 + $0x68] sm:$0xff]
      %v254 = vld [vmem:[%s3 + $0x70] sm:$0xff]
      %v255 = vld [vmem:[%s3 + $0x78] sm:$0xff]
      %v256 = vld [vmem:[#allocation2 + $0x1] sm:$0xff]
      %v257 = vld [vmem:[#allocation2 + $0x9] sm:$0xff]
      %s258 = scalar_lea.vmem %s3, 128
      %v259 = vld [vmem:[%s258] sm:$0xff]
      %v260 = vld [vmem:[%s258 + $0x8] sm:$0xff]
      %v261 = vld [vmem:[%s258 + $0x10] sm:$0xff]
      %v262 = vld [vmem:[%s258 + $0x18] sm:$0xff]
      %v263 = vld [vmem:[%s258 + $0x20] sm:$0xff]
      %v264 = vld [vmem:[%s258 + $0x28] sm:$0xff]
      %v265 = vld [vmem:[%s258 + $0x30] sm:$0xff]
      %v266 = vld [vmem:[%s258 + $0x38] sm:$0xff]
      %v267 = vld [vmem:[%s258 + $0x40] sm:$0xff]
      %v268 = vld [vmem:[%s258 + $0x48] sm:$0xff]
      %v269 = vld [vmem:[%s258 + $0x50] sm:$0xff]
      %v270 = vld [vmem:[%s258 + $0x58] sm:$0xff]
      %v271 = vld [vmem:[%s258 + $0x60] sm:$0xff]
      %v272 = vld [vmem:[%s258 + $0x68] sm:$0xff]
      %v273 = vld [vmem:[%s258 + $0x70] sm:$0xff]
      %v274 = vld [vmem:[%s258 + $0x78] sm:$0xff]
      %275 = vmatprep.subr.mxu0 0.0
      %276 = vmatpush1.msra.mxu0 %v259
      %277 = vmatprep.subr.mxu0 0.0
      %278 = vmatpush1.msra.mxu0 %v260
      %279 = vmatprep.subr.mxu0 0.0
      %280 = vmatpush1.msra.mxu0 %v261
      %281 = vmatprep.subr.mxu0 0.0
      %282 = vmatpush1.msra.mxu0 %v262
      %283 = vmatprep.subr.mxu0 0.0
      %284 = vmatpush1.msra.mxu0 %v263
      %285 = vmatprep.subr.mxu0 0.0
      %286 = vmatpush1.msra.mxu0 %v264
      %287 = vmatprep.subr.mxu0 0.0
      %288 = vmatpush1.msra.mxu0 %v265
      %289 = vmatprep.subr.mxu0 0.0
      %290 = vmatpush1.msra.mxu0 %v266
      %291 = vmatprep.subr.mxu0 0.0
      %292 = vmatpush1.msra.mxu0 %v267
      %293 = vmatprep.subr.mxu0 0.0
      %294 = vmatpush1.msra.mxu0 %v268
      %295 = vmatprep.subr.mxu0 0.0
      %296 = vmatpush1.msra.mxu0 %v269
      %297 = vmatprep.subr.mxu0 0.0
      %298 = vmatpush1.msra.mxu0 %v270
      %299 = vmatprep.subr.mxu0 0.0
      %300 = vmatpush1.msra.mxu0 %v271
      %301 = vmatprep.subr.mxu0 0.0
      %302 = vmatpush1.msra.mxu0 %v272
      %303 = vmatprep.subr.mxu0 0.0
      %304 = vmatpush1.msra.mxu0 %v273
      %305 = vmatprep.subr.mxu0 0.0
      %306 = vmatpush1.msra.mxu0 %v274
      %307 = vmatprep.subr.mxu0 0.0
      %308 = vmatpush1.msra.mxu0 0.0
      %309 = vmatprep.subr.mxu0 0.0
      %310 = vmatpush1.msra.mxu0 0.0
      %311 = vmatprep.subr.mxu0 0.0
      %312 = vmatpush1.msra.mxu0 0.0
      %313 = vmatprep.subr.mxu0 0.0
      %314 = vmatpush1.msra.mxu0 0.0
      %315 = vmatprep.subr.mxu0 0.0
      %316 = vmatpush1.msra.mxu0 0.0
      %317 = vmatprep.subr.mxu0 0.0
      %318 = vmatpush1.msra.mxu0 0.0
      %319 = vmatprep.subr.mxu0 0.0
      %320 = vmatpush1.msra.mxu0 0.0
      %321 = vmatprep.subr.mxu0 0.0
      %322 = vmatpush1.msra.mxu0 0.0
      %323 = vmatprep.subr.mxu0 0.0
      %324 = vmatpush1.msra.mxu0 0.0
      %325 = vmatprep.subr.mxu0 0.0
      %326 = vmatpush1.msra.mxu0 0.0
      %327 = vmatprep.subr.mxu0 0.0
      %328 = vmatpush1.msra.mxu0 0.0
      %329 = vmatprep.subr.mxu0 0.0
      %330 = vmatpush1.msra.mxu0 0.0
      %331 = vmatprep.subr.mxu0 0.0
      %332 = vmatpush1.msra.mxu0 0.0
      %333 = vmatprep.subr.mxu0 0.0
      %334 = vmatpush1.msra.mxu0 0.0
      %335 = vmatprep.subr.mxu0 0.0
      %336 = vmatpush1.msra.mxu0 0.0
      %337 = vmatprep.subr.mxu0 0.0
      %338 = vmatpush1.msra.mxu0 0.0
      %339 = vmatprep.mubr.f32.mxu0 0.0
      %340 = vmatmul.mubr.f32.gmra.mrb[0].mxu0 %v256
      %v341 = vpop.f32.mrb[0].mxu0
      %v342 = vadd.f32 0.0, %v341
      %v343 = vpop.f32.mrb[0].mxu0
      %344 = vmatprep.mubr.f32.mxu0 0.0
      %345 = vmatmul.mubr.f32.gmra.mrb[0].mxu0 %v257
      %v346 = vpop.f32.mrb[0].mxu0
      %v347 = vadd.f32 0.0, %v346
      %v348 = vpop.f32.mrb[0].mxu0
      %349 = vdwg.mxu0
      %350 = vmatprep.subr.mxu0 0.0
      %351 = vmatpush1.msra.mxu0 %v240
      %352 = vmatprep.subr.mxu0 0.0
      %353 = vmatpush1.msra.mxu0 %v241
      %354 = vmatprep.subr.mxu0 0.0
      %355 = vmatpush1.msra.mxu0 %v242
      %356 = vmatprep.subr.mxu0 0.0
      %357 = vmatpush1.msra.mxu0 %v243
      %358 = vmatprep.subr.mxu0 0.0
      %359 = vmatpush1.msra.mxu0 %v244
      %360 = vmatprep.subr.mxu0 0.0
      %361 = vmatpush1.msra.mxu0 %v245
      %362 = vmatprep.subr.mxu0 0.0
      %363 = vmatpush1.msra.mxu0 %v246
      %364 = vmatprep.subr.mxu0 0.0
      %365 = vmatpush1.msra.mxu0 %v247
      %366 = vmatprep.subr.mxu0 0.0
      %367 = vmatpush1.msra.mxu0 %v248
      %368 = vmatprep.subr.mxu0 0.0
      %369 = vmatpush1.msra.mxu0 %v249
      %370 = vmatprep.subr.mxu0 0.0
      %371 = vmatpush1.msra.mxu0 %v250
      %372 = vmatprep.subr.mxu0 0.0
      %373 = vmatpush1.msra.mxu0 %v251
      %374 = vmatprep.subr.mxu0 0.0
      %375 = vmatpush1.msra.mxu0 %v252
      %376 = vmatprep.subr.mxu0 0.0
      %377 = vmatpush1.msra.mxu0 %v253
      %378 = vmatprep.subr.mxu0 0.0
      %379 = vmatpush1.msra.mxu0 %v254
      %380 = vmatprep.subr.mxu0 0.0
      %381 = vmatpush1.msra.mxu0 %v255
      %382 = vmatprep.subr.mxu0 0.0
      %383 = vmatpush1.msra.mxu0 0.0
      %384 = vmatprep.subr.mxu0 0.0
      %385 = vmatpush1.msra.mxu0 0.0
      %386 = vmatprep.subr.mxu0 0.0
      %387 = vmatpush1.msra.mxu0 0.0
      %388 = vmatprep.subr.mxu0 0.0
      %389 = vmatpush1.msra.mxu0 0.0
      %390 = vmatprep.subr.mxu0 0.0
      %391 = vmatpush1.msra.mxu0 0.0
      %392 = vmatprep.subr.mxu0 0.0
      %393 = vmatpush1.msra.mxu0 0.0
      %394 = vmatprep.subr.mxu0 0.0
      %395 = vmatpush1.msra.mxu0 0.0
      %396 = vmatprep.subr.mxu0 0.0
      %397 = vmatpush1.msra.mxu0 0.0
      %398 = vmatprep.subr.mxu0 0.0
      %399 = vmatpush1.msra.mxu0 0.0
      %400 = vmatprep.subr.mxu0 0.0
      %401 = vmatpush1.msra.mxu0 0.0
      %402 = vmatprep.subr.mxu0 0.0
      %403 = vmatpush1.msra.mxu0 0.0
      %404 = vmatprep.subr.mxu0 0.0
      %405 = vmatpush1.msra.mxu0 0.0
      %406 = vmatprep.subr.mxu0 0.0
      %407 = vmatpush1.msra.mxu0 0.0
      %408 = vmatprep.subr.mxu0 0.0
      %409 = vmatpush1.msra.mxu0 0.0
      %410 = vmatprep.subr.mxu0 0.0
      %411 = vmatpush1.msra.mxu0 0.0
      %412 = vmatprep.subr.mxu0 0.0
      %413 = vmatpush1.msra.mxu0 0.0
      %414 = vmatprep.mubr.f32.mxu0 0.0
      %415 = vmatmul.mubr.f32.gmra.mrb[0].mxu0 %v238
      %v416 = vpop.f32.mrb[0].mxu0
      %v417 = vadd.f32 %v342, %v416
      %v418 = vpop.f32.mrb[0].mxu0
      %419 = vmatprep.mubr.f32.mxu0 0.0
      %420 = vmatmul.mubr.f32.gmra.mrb[0].mxu0 %v239
      %v421 = vpop.f32.mrb[0].mxu0
      %v422 = vadd.f32 %v347, %v421
      %v423 = vpop.f32.mrb[0].mxu0
      %424 = vdwg.mxu0
      %v425 = vld [vmem:[#allocation2 + $0x2] sm:$0xff]
      %v426 = vld [vmem:[#allocation2 + $0xa] sm:$0xff]
      %s427 = scalar_lea.vmem %s3, 256
      %v428 = vld [vmem:[%s427] sm:$0xff]
      %v429 = vld [vmem:[%s427 + $0x8] sm:$0xff]
      %v430 = vld [vmem:[%s427 + $0x10] sm:$0xff]
      %v431 = vld [vmem:[%s427 + $0x18] sm:$0xff]
      %v432 = vld [vmem:[%s427 + $0x20] sm:$0xff]
      %v433 = vld [vmem:[%s427 + $0x28] sm:$0xff]
      %v434 = vld [vmem:[%s427 + $0x30] sm:$0xff]
      %v435 = vld [vmem:[%s427 + $0x38] sm:$0xff]
      %v436 = vld [vmem:[%s427 + $0x40] sm:$0xff]
      %v437 = vld [vmem:[%s427 + $0x48] sm:$0xff]
      %v438 = vld [vmem:[%s427 + $0x50] sm:$0xff]
      %v439 = vld [vmem:[%s427 + $0x58] sm:$0xff]
      %v440 = vld [vmem:[%s427 + $0x60] sm:$0xff]
      %v441 = vld [vmem:[%s427 + $0x68] sm:$0xff]
      %v442 = vld [vmem:[%s427 + $0x70] sm:$0xff]
      %v443 = vld [vmem:[%s427 + $0x78] sm:$0xff]
      %444 = vmatprep.subr.mxu0 0.0
      %445 = vmatpush1.msra.mxu0 %v428
      %446 = vmatprep.subr.mxu0 0.0
      %447 = vmatpush1.msra.mxu0 %v429
      %448 = vmatprep.subr.mxu0 0.0
      %449 = vmatpush1.msra.mxu0 %v430
      %450 = vmatprep.subr.mxu0 0.0
      %451 = vmatpush1.msra.mxu0 %v431
      %452 = vmatprep.subr.mxu0 0.0
      %453 = vmatpush1.msra.mxu0 %v432
      %454 = vmatprep.subr.mxu0 0.0
      %455 = vmatpush1.msra.mxu0 %v433
      %456 = vmatprep.subr.mxu0 0.0
      %457 = vmatpush1.msra.mxu0 %v434
      %458 = vmatprep.subr.mxu0 0.0
      %459 = vmatpush1.msra.mxu0 %v435
      %460 = vmatprep.subr.mxu0 0.0
      %461 = vmatpush1.msra.mxu0 %v436
      %462 = vmatprep.subr.mxu0 0.0
      %463 = vmatpush1.msra.mxu0 %v437
      %464 = vmatprep.subr.mxu0 0.0
      %465 = vmatpush1.msra.mxu0 %v438
      %466 = vmatprep.subr.mxu0 0.0
      %467 = vmatpush1.msra.mxu0 %v439
      %468 = vmatprep.subr.mxu0 0.0
      %469 = vmatpush1.msra.mxu0 %v440
      %470 = vmatprep.subr.mxu0 0.0
      %471 = vmatpush1.msra.mxu0 %v441
      %472 = vmatprep.subr.mxu0 0.0
      %473 = vmatpush1.msra.mxu0 %v442
      %474 = vmatprep.subr.mxu0 0.0
      %475 = vmatpush1.msra.mxu0 %v443
      %476 = vmatprep.subr.mxu0 0.0
      %477 = vmatpush1.msra.mxu0 0.0
      %478 = vmatprep.subr.mxu0 0.0
      %479 = vmatpush1.msra.mxu0 0.0
      %480 = vmatprep.subr.mxu0 0.0
      %481 = vmatpush1.msra.mxu0 0.0
      %482 = vmatprep.subr.mxu0 0.0
      %483 = vmatpush1.msra.mxu0 0.0
      %484 = vmatprep.subr.mxu0 0.0
      %485 = vmatpush1.msra.mxu0 0.0
      %486 = vmatprep.subr.mxu0 0.0
      %487 = vmatpush1.msra.mxu0 0.0
      %488 = vmatprep.subr.mxu0 0.0
      %489 = vmatpush1.msra.mxu0 0.0
      %490 = vmatprep.subr.mxu0 0.0
      %491 = vmatpush1.msra.mxu0 0.0
      %492 = vmatprep.subr.mxu0 0.0
      %493 = vmatpush1.msra.mxu0 0.0
      %494 = vmatprep.subr.mxu0 0.0
      %495 = vmatpush1.msra.mxu0 0.0
      %496 = vmatprep.subr.mxu0 0.0
      %497 = vmatpush1.msra.mxu0 0.0
      %498 = vmatprep.subr.mxu0 0.0
      %499 = vmatpush1.msra.mxu0 0.0
      %500 = vmatprep.subr.mxu0 0.0
      %501 = vmatpush1.msra.mxu0 0.0
      %502 = vmatprep.subr.mxu0 0.0
      %503 = vmatpush1.msra.mxu0 0.0
      %504 = vmatprep.subr.mxu0 0.0
      %505 = vmatpush1.msra.mxu0 0.0
      %506 = vmatprep.subr.mxu0 0.0
      %507 = vmatpush1.msra.mxu0 0.0
      %508 = vmatprep.mubr.f32.mxu0 0.0
      %509 = vmatmul.mubr.f32.gmra.mrb[0].mxu0 %v425
      %v510 = vpop.f32.mrb[0].mxu0
      %v511 = vadd.f32 0.0, %v510
      %v512 = vpop.f32.mrb[0].mxu0
      %513 = vmatprep.mubr.f32.mxu0 0.0
      %514 = vmatmul.mubr.f32.gmra.mrb[0].mxu0 %v426
      %v515 = vpop.f32.mrb[0].mxu0
      %v516 = vadd.f32 0.0, %v515
      %v517 = vpop.f32.mrb[0].mxu0
      %518 = vdwg.mxu0
      %v519 = vadd.f32 %v417, %v511
      %v520 = vadd.f32 %v422, %v516
      %v521 = vld [vmem:[%s4] sm:$0x1]
      %v523 = vlaneseq
      %v524 = vshrl.u32 %v523, 7
      %v525 = vsub.s32 0, %v524
      %v526 = vrot.slane %v521, %v525
      %v528 = vadd.f32 %v519, %v526
      %v529 = vadd.f32 %v520, %v526
      %v530 = vmax.f32 %v528, 0.0
      %v531 = vmax.f32 %v529, 0.0
      %532 = vst [vmem:[#allocation2 + $0x1] sm:$0xff] %v530
      %533 = vst [vmem:[#allocation2 + $0x9] sm:$0xff] %v531
      %v534 = vld [vmem:[#allocation2] sm:$0xff]
      %v535 = vld [vmem:[#allocation2 + $0x8] sm:$0xff]
      %s536 = scalar_lea.vmem %s3, 384
      %v537 = vld [vmem:[%s536] sm:$0xff]
      %v538 = vld [vmem:[%s536 + $0x8] sm:$0xff]
      %v539 = vld [vmem:[%s536 + $0x10] sm:$0xff]
      %v540 = vld [vmem:[%s536 + $0x18] sm:$0xff]
      %v541 = vld [vmem:[%s536 + $0x20] sm:$0xff]
      %v542 = vld [vmem:[%s536 + $0x28] sm:$0xff]
      %v543 = vld [vmem:[%s536 + $0x30] sm:$0xff]
      %v544 = vld [vmem:[%s536 + $0x38] sm:$0xff]
      %v545 = vld [vmem:[%s536 + $0x40] sm:$0xff]
      %v546 = vld [vmem:[%s536 + $0x48] sm:$0xff]
      %v547 = vld [vmem:[%s536 + $0x50] sm:$0xff]
      %v548 = vld [vmem:[%s536 + $0x58] sm:$0xff]
      %v549 = vld [vmem:[%s536 + $0x60] sm:$0xff]
      %v550 = vld [vmem:[%s536 + $0x68] sm:$0xff]
      %v551 = vld [vmem:[%s536 + $0x70] sm:$0xff]
      %v552 = vld [vmem:[%s536 + $0x78] sm:$0xff]
      %v553 = vld [vmem:[#allocation2 + $0x1] sm:$0xff]
      %v554 = vld [vmem:[#allocation2 + $0x9] sm:$0xff]
      %s555 = scalar_lea.vmem %s3, 512
      %v556 = vld [vmem:[%s555] sm:$0xff]
      %v557 = vld [vmem:[%s555 + $0x8] sm:$0xff]
      %v558 = vld [vmem:[%s555 + $0x10] sm:$0xff]
      %v559 = vld [vmem:[%s555 + $0x18] sm:$0xff]
      %v560 = vld [vmem:[%s555 + $0x20] sm:$0xff]
      %v561 = vld [vmem:[%s555 + $0x28] sm:$0xff]
      %v562 = vld [vmem:[%s555 + $0x30] sm:$0xff]
      %v563 = vld [vmem:[%s555 + $0x38] sm:$0xff]
      %v564 = vld [vmem:[%s555 + $0x40] sm:$0xff]
      %v565 = vld [vmem:[%s555 + $0x48] sm:$0xff]
      %v566 = vld [vmem:[%s555 + $0x50] sm:$0xff]
      %v567 = vld [vmem:[%s555 + $0x58] sm:$0xff]
      %v568 = vld [vmem:[%s555 + $0x60] sm:$0xff]
      %v569 = vld [vmem:[%s555 + $0x68] sm:$0xff]
      %v570 = vld [vmem:[%s555 + $0x70] sm:$0xff]
      %v571 = vld [vmem:[%s555 + $0x78] sm:$0xff]
      %572 = vmatprep.subr.mxu0 0.0
      %573 = vmatpush1.msra.mxu0 %v556
      %574 = vmatprep.subr.mxu0 0.0
      %575 = vmatpush1.msra.mxu0 %v557
      %576 = vmatprep.subr.mxu0 0.0
      %577 = vmatpush1.msra.mxu0 %v558
      %578 = vmatprep.subr.mxu0 0.0
      %579 = vmatpush1.msra.mxu0 %v559
      %580 = vmatprep.subr.mxu0 0.0
      %581 = vmatpush1.msra.mxu0 %v560
      %582 = vmatprep.subr.mxu0 0.0
      %583 = vmatpush1.msra.mxu0 %v561
      %584 = vmatprep.subr.mxu0 0.0
      %585 = vmatpush1.msra.mxu0 %v562
      %586 = vmatprep.subr.mxu0 0.0
      %587 = vmatpush1.msra.mxu0 %v563
      %588 = vmatprep.subr.mxu0 0.0
      %589 = vmatpush1.msra.mxu0 %v564
      %590 = vmatprep.subr.mxu0 0.0
      %591 = vmatpush1.msra.mxu0 %v565
      %592 = vmatprep.subr.mxu0 0.0
      %593 = vmatpush1.msra.mxu0 %v566
      %594 = vmatprep.subr.mxu0 0.0
      %595 = vmatpush1.msra.mxu0 %v567
      %596 = vmatprep.subr.mxu0 0.0
      %597 = vmatpush1.msra.mxu0 %v568
      %598 = vmatprep.subr.mxu0 0.0
      %599 = vmatpush1.msra.mxu0 %v569
      %600 = vmatprep.subr.mxu0 0.0
      %601 = vmatpush1.msra.mxu0 %v570
      %602 = vmatprep.subr.mxu0 0.0
      %603 = vmatpush1.msra.mxu0 %v571
      %604 = vmatprep.subr.mxu0 0.0
      %605 = vmatpush1.msra.mxu0 0.0
      %606 = vmatprep.subr.mxu0 0.0
      %607 = vmatpush1.msra.mxu0 0.0
      %608 = vmatprep.subr.mxu0 0.0
      %609 = vmatpush1.msra.mxu0 0.0
      %610 = vmatprep.subr.mxu0 0.0
      %611 = vmatpush1.msra.mxu0 0.0
      %612 = vmatprep.subr.mxu0 0.0
      %613 = vmatpush1.msra.mxu0 0.0
      %614 = vmatprep.subr.mxu0 0.0
      %615 = vmatpush1.msra.mxu0 0.0
      %616 = vmatprep.subr.mxu0 0.0
      %617 = vmatpush1.msra.mxu0 0.0
      %618 = vmatprep.subr.mxu0 0.0
      %619 = vmatpush1.msra.mxu0 0.0
      %620 = vmatprep.subr.mxu0 0.0
      %621 = vmatpush1.msra.mxu0 0.0
      %622 = vmatprep.subr.mxu0 0.0
      %623 = vmatpush1.msra.mxu0 0.0
      %624 = vmatprep.subr.mxu0 0.0
      %625 = vmatpush1.msra.mxu0 0.0
      %626 = vmatprep.subr.mxu0 0.0
      %627 = vmatpush1.msra.mxu0 0.0
      %628 = vmatprep.subr.mxu0 0.0
      %629 = vmatpush1.msra.mxu0 0.0
      %630 = vmatprep.subr.mxu0 0.0
      %631 = vmatpush1.msra.mxu0 0.0
      %632 = vmatprep.subr.mxu0 0.0
      %633 = vmatpush1.msra.mxu0 0.0
      %634 = vmatprep.subr.mxu0 0.0
      %635 = vmatpush1.msra.mxu0 0.0
      %636 = vmatprep.mubr.f32.mxu0 0.0
      %637 = vmatmul.mubr.f32.gmra.mrb[0].mxu0 %v553
      %v638 = vpop.f32.mrb[0].mxu0
      %v639 = vadd.f32 0.0, %v638
      %v640 = vpop.f32.mrb[0].mxu0
      %641 = vmatprep.mubr.f32.mxu0 0.0
      %642 = vmatmul.mubr.f32.gmra.mrb[0].mxu0 %v554
      %v643 = vpop.f32.mrb[0].mxu0
      %v644 = vadd.f32 0.0, %v643
      %v645 = vpop.f32.mrb[0].mxu0
      %646 = vdwg.mxu0
      %647 = vmatprep.subr.mxu0 0.0
      %648 = vmatpush1.msra.mxu0 %v537
      %649 = vmatprep.subr.mxu0 0.0
      %650 = vmatpush1.msra.mxu0 %v538
      %651 = vmatprep.subr.mxu0 0.0
      %652 = vmatpush1.msra.mxu0 %v539
      %653 = vmatprep.subr.mxu0 0.0
      %654 = vmatpush1.msra.mxu0 %v540
      %655 = vmatprep.subr.mxu0 0.0
      %656 = vmatpush1.msra.mxu0 %v541
      %657 = vmatprep.subr.mxu0 0.0
      %658 = vmatpush1.msra.mxu0 %v542
      %659 = vmatprep.subr.mxu0 0.0
      %660 = vmatpush1.msra.mxu0 %v543
      %661 = vmatprep.subr.mxu0 0.0
      %662 = vmatpush1.msra.mxu0 %v544
      %663 = vmatprep.subr.mxu0 0.0
      %664 = vmatpush1.msra.mxu0 %v545
      %665 = vmatprep.subr.mxu0 0.0
      %666 = vmatpush1.msra.mxu0 %v546
      %667 = vmatprep.subr.mxu0 0.0
      %668 = vmatpush1.msra.mxu0 %v547
      %669 = vmatprep.subr.mxu0 0.0
      %670 = vmatpush1.msra.mxu0 %v548
      %671 = vmatprep.subr.mxu0 0.0
      %672 = vmatpush1.msra.mxu0 %v549
      %673 = vmatprep.subr.mxu0 0.0
      %674 = vmatpush1.msra.mxu0 %v550
      %675 = vmatprep.subr.mxu0 0.0
      %676 = vmatpush1.msra.mxu0 %v551
      %677 = vmatprep.subr.mxu0 0.0
      %678 = vmatpush1.msra.mxu0 %v552
      %679 = vmatprep.subr.mxu0 0.0
      %680 = vmatpush1.msra.mxu0 0.0
      %681 = vmatprep.subr.mxu0 0.0
      %682 = vmatpush1.msra.mxu0 0.0
      %683 = vmatprep.subr.mxu0 0.0
      %684 = vmatpush1.msra.mxu0 0.0
      %685 = vmatprep.subr.mxu0 0.0
      %686 = vmatpush1.msra.mxu0 0.0
      %687 = vmatprep.subr.mxu0 0.0
      %688 = vmatpush1.msra.mxu0 0.0
      %689 = vmatprep.subr.mxu0 0.0
      %690 = vmatpush1.msra.mxu0 0.0
      %691 = vmatprep.subr.mxu0 0.0
      %692 = vmatpush1.msra.mxu0 0.0
      %693 = vmatprep.subr.mxu0 0.0
      %694 = vmatpush1.msra.mxu0 0.0
      %695 = vmatprep.subr.mxu0 0.0
      %696 = vmatpush1.msra.mxu0 0.0
      %697 = vmatprep.subr.mxu0 0.0
      %698 = vmatpush1.msra.mxu0 0.0
      %699 = vmatprep.subr.mxu0 0.0
      %700 = vmatpush1.msra.mxu0 0.0
      %701 = vmatprep.subr.mxu0 0.0
      %702 = vmatpush1.msra.mxu0 0.0
      %703 = vmatprep.subr.mxu0 0.0
      %704 = vmatpush1.msra.mxu0 0.0
      %705 = vmatprep.subr.mxu0 0.0
      %706 = vmatpush1.msra.mxu0 0.0
      %707 = vmatprep.subr.mxu0 0.0
      %708 = vmatpush1.msra.mxu0 0.0
      %709 = vmatprep.subr.mxu0 0.0
      %710 = vmatpush1.msra.mxu0 0.0
      %711 = vmatprep.mubr.f32.mxu0 0.0
      %712 = vmatmul.mubr.f32.gmra.mrb[0].mxu0 %v534
      %v713 = vpop.f32.mrb[0].mxu0
      %v714 = vadd.f32 %v639, %v713
      %v715 = vpop.f32.mrb[0].mxu0
      %716 = vmatprep.mubr.f32.mxu0 0.0
      %717 = vmatmul.mubr.f32.gmra.mrb[0].mxu0 %v535
      %v718 = vpop.f32.mrb[0].mxu0
      %v719 = vadd.f32 %v644, %v718
      %v720 = vpop.f32.mrb[0].mxu0
      %721 = vdwg.mxu0
      %v722 = vld [vmem:[#allocation2 + $0x2] sm:$0xff]
      %v723 = vld [vmem:[#allocation2 + $0xa] sm:$0xff]
      %s724 = scalar_lea.vmem %s3, 640
      %v725 = vld [vmem:[%s724] sm:$0xff]
      %v726 = vld [vmem:[%s724 + $0x8] sm:$0xff]
      %v727 = vld [vmem:[%s724 + $0x10] sm:$0xff]
      %v728 = vld [vmem:[%s724 + $0x18] sm:$0xff]
      %v729 = vld [vmem:[%s724 + $0x20] sm:$0xff]
      %v730 = vld [vmem:[%s724 + $0x28] sm:$0xff]
      %v731 = vld [vmem:[%s724 + $0x30] sm:$0xff]
      %v732 = vld [vmem:[%s724 + $0x38] sm:$0xff]
      %v733 = vld [vmem:[%s724 + $0x40] sm:$0xff]
      %v734 = vld [vmem:[%s724 + $0x48] sm:$0xff]
      %v735 = vld [vmem:[%s724 + $0x50] sm:$0xff]
      %v736 = vld [vmem:[%s724 + $0x58] sm:$0xff]
      %v737 = vld [vmem:[%s724 + $0x60] sm:$0xff]
      %v738 = vld [vmem:[%s724 + $0x68] sm:$0xff]
      %v739 = vld [vmem:[%s724 + $0x70] sm:$0xff]
      %v740 = vld [vmem:[%s724 + $0x78] sm:$0xff]
      %741 = vmatprep.subr.mxu0 0.0
      %742 = vmatpush1.msra.mxu0 %v725
      %743 = vmatprep.subr.mxu0 0.0
      %744 = vmatpush1.msra.mxu0 %v726
      %745 = vmatprep.subr.mxu0 0.0
      %746 = vmatpush1.msra.mxu0 %v727
      %747 = vmatprep.subr.mxu0 0.0
      %748 = vmatpush1.msra.mxu0 %v728
      %749 = vmatprep.subr.mxu0 0.0
      %750 = vmatpush1.msra.mxu0 %v729
      %751 = vmatprep.subr.mxu0 0.0
      %752 = vmatpush1.msra.mxu0 %v730
      %753 = vmatprep.subr.mxu0 0.0
      %754 = vmatpush1.msra.mxu0 %v731
      %755 = vmatprep.subr.mxu0 0.0
      %756 = vmatpush1.msra.mxu0 %v732
      %757 = vmatprep.subr.mxu0 0.0
      %758 = vmatpush1.msra.mxu0 %v733
      %759 = vmatprep.subr.mxu0 0.0
      %760 = vmatpush1.msra.mxu0 %v734
      %761 = vmatprep.subr.mxu0 0.0
      %762 = vmatpush1.msra.mxu0 %v735
      %763 = vmatprep.subr.mxu0 0.0
      %764 = vmatpush1.msra.mxu0 %v736
      %765 = vmatprep.subr.mxu0 0.0
      %766 = vmatpush1.msra.mxu0 %v737
      %767 = vmatprep.subr.mxu0 0.0
      %768 = vmatpush1.msra.mxu0 %v738
      %769 = vmatprep.subr.mxu0 0.0
      %770 = vmatpush1.msra.mxu0 %v739
      %771 = vmatprep.subr.mxu0 0.0
      %772 = vmatpush1.msra.mxu0 %v740
      %773 = vmatprep.subr.mxu0 0.0
      %774 = vmatpush1.msra.mxu0 0.0
      %775 = vmatprep.subr.mxu0 0.0
      %776 = vmatpush1.msra.mxu0 0.0
      %777 = vmatprep.subr.mxu0 0.0
      %778 = vmatpush1.msra.mxu0 0.0
      %779 = vmatprep.subr.mxu0 0.0
      %780 = vmatpush1.msra.mxu0 0.0
      %781 = vmatprep.subr.mxu0 0.0
      %782 = vmatpush1.msra.mxu0 0.0
      %783 = vmatprep.subr.mxu0 0.0
      %784 = vmatpush1.msra.mxu0 0.0
      %785 = vmatprep.subr.mxu0 0.0
      %786 = vmatpush1.msra.mxu0 0.0
      %787 = vmatprep.subr.mxu0 0.0
      %788 = vmatpush1.msra.mxu0 0.0
      %789 = vmatprep.subr.mxu0 0.0
      %790 = vmatpush1.msra.mxu0 0.0
      %791 = vmatprep.subr.mxu0 0.0
      %792 = vmatpush1.msra.mxu0 0.0
      %793 = vmatprep.subr.mxu0 0.0
      %794 = vmatpush1.msra.mxu0 0.0
      %795 = vmatprep.subr.mxu0 0.0
      %796 = vmatpush1.msra.mxu0 0.0
      %797 = vmatprep.subr.mxu0 0.0
      %798 = vmatpush1.msra.mxu0 0.0
      %799 = vmatprep.subr.mxu0 0.0
      %800 = vmatpush1.msra.mxu0 0.0
      %801 = vmatprep.subr.mxu0 0.0
      %802 = vmatpush1.msra.mxu0 0.0
      %803 = vmatprep.subr.mxu0 0.0
      %804 = vmatpush1.msra.mxu0 0.0
      %805 = vmatprep.mubr.f32.mxu0 0.0
      %806 = vmatmul.mubr.f32.gmra.mrb[0].mxu0 %v722
      %v807 = vpop.f32.mrb[0].mxu0
      %v808 = vadd.f32 0.0, %v807
      %v809 = vpop.f32.mrb[0].mxu0
      %810 = vmatprep.mubr.f32.mxu0 0.0
      %811 = vmatmul.mubr.f32.gmra.mrb[0].mxu0 %v723
      %v812 = vpop.f32.mrb[0].mxu0
      %v813 = vadd.f32 0.0, %v812
      %v814 = vpop.f32.mrb[0].mxu0
      %815 = vdwg.mxu0
      %v816 = vadd.f32 %v714, %v808
      %v817 = vadd.f32 %v719, %v813
      %s818 = scalar_lea.vmem %s4, 1
      %v819 = vld [vmem:[%s818] sm:$0x1]
      %v821 = vlaneseq
      %v822 = vshrl.u32 %v821, 7
      %v823 = vsub.s32 0, %v822
      %v824 = vrot.slane %v819, %v823
      %v826 = vadd.f32 %v816, %v824
      %v827 = vadd.f32 %v817, %v824
      %v828 = vmax.f32 %v826, 0.0
      %v829 = vmax.f32 %v827, 0.0
      %830 = vst [vmem:[#allocation2 + $0x1] sm:$0xff] %v828
      %831 = vst [vmem:[#allocation2 + $0x9] sm:$0xff] %v829
      %v832 = vld [vmem:[#allocation2] sm:$0xff]
      %v833 = vld [vmem:[#allocation2 + $0x8] sm:$0xff]
      %s834 = scalar_lea.vmem %s3, 768
      %v835 = vld [vmem:[%s834] sm:$0xff]
      %v836 = vld [vmem:[%s834 + $0x8] sm:$0xff]
      %v837 = vld [vmem:[%s834 + $0x10] sm:$0xff]
      %v838 = vld [vmem:[%s834 + $0x18] sm:$0xff]
      %v839 = vld [vmem:[%s834 + $0x20] sm:$0xff]
      %v840 = vld [vmem:[%s834 + $0x28] sm:$0xff]
      %v841 = vld [vmem:[%s834 + $0x30] sm:$0xff]
      %v842 = vld [vmem:[%s834 + $0x38] sm:$0xff]
      %v843 = vld [vmem:[%s834 + $0x40] sm:$0xff]
      %v844 = vld [vmem:[%s834 + $0x48] sm:$0xff]
      %v845 = vld [vmem:[%s834 + $0x50] sm:$0xff]
      %v846 = vld [vmem:[%s834 + $0x58] sm:$0xff]
      %v847 = vld [vmem:[%s834 + $0x60] sm:$0xff]
      %v848 = vld [vmem:[%s834 + $0x68] sm:$0xff]
      %v849 = vld [vmem:[%s834 + $0x70] sm:$0xff]
      %v850 = vld [vmem:[%s834 + $0x78] sm:$0xff]
      %v851 = vld [vmem:[#allocation2 + $0x1] sm:$0xff]
      %v852 = vld [vmem:[#allocation2 + $0x9] sm:$0xff]
      %s853 = scalar_lea.vmem %s3, 896
      %v854 = vld [vmem:[%s853] sm:$0xff]
      %v855 = vld [vmem:[%s853 + $0x8] sm:$0xff]
      %v856 = vld [vmem:[%s853 + $0x10] sm:$0xff]
      %v857 = vld [vmem:[%s853 + $0x18] sm:$0xff]
      %v858 = vld [vmem:[%s853 + $0x20] sm:$0xff]
      %v859 = vld [vmem:[%s853 + $0x28] sm:$0xff]
      %v860 = vld [vmem:[%s853 + $0x30] sm:$0xff]
      %v861 = vld [vmem:[%s853 + $0x38] sm:$0xff]
      %v862 = vld [vmem:[%s853 + $0x40] sm:$0xff]
      %v863 = vld [vmem:[%s853 + $0x48] sm:$0xff]
      %v864 = vld [vmem:[%s853 + $0x50] sm:$0xff]
      %v865 = vld [vmem:[%s853 + $0x58] sm:$0xff]
      %v866 = vld [vmem:[%s853 + $0x60] sm:$0xff]
      %v867 = vld [vmem:[%s853 + $0x68] sm:$0xff]
      %v868 = vld [vmem:[%s853 + $0x70] sm:$0xff]
      %v869 = vld [vmem:[%s853 + $0x78] sm:$0xff]
      %870 = vmatprep.subr.mxu0 0.0
      %871 = vmatpush1.msra.mxu0 %v854
      %872 = vmatprep.subr.mxu0 0.0
      %873 = vmatpush1.msra.mxu0 %v855
      %874 = vmatprep.subr.mxu0 0.0
      %875 = vmatpush1.msra.mxu0 %v856
      %876 = vmatprep.subr.mxu0 0.0
      %877 = vmatpush1.msra.mxu0 %v857
      %878 = vmatprep.subr.mxu0 0.0
      %879 = vmatpush1.msra.mxu0 %v858
      %880 = vmatprep.subr.mxu0 0.0
      %881 = vmatpush1.msra.mxu0 %v859
      %882 = vmatprep.subr.mxu0 0.0
      %883 = vmatpush1.msra.mxu0 %v860
      %884 = vmatprep.subr.mxu0 0.0
      %885 = vmatpush1.msra.mxu0 %v861
      %886 = vmatprep.subr.mxu0 0.0
      %887 = vmatpush1.msra.mxu0 %v862
      %888 = vmatprep.subr.mxu0 0.0
      %889 = vmatpush1.msra.mxu0 %v863
      %890 = vmatprep.subr.mxu0 0.0
      %891 = vmatpush1.msra.mxu0 %v864
      %892 = vmatprep.subr.mxu0 0.0
      %893 = vmatpush1.msra.mxu0 %v865
      %894 = vmatprep.subr.mxu0 0.0
      %895 = vmatpush1.msra.mxu0 %v866
      %896 = vmatprep.subr.mxu0 0.0
      %897 = vmatpush1.msra.mxu0 %v867
      %898 = vmatprep.subr.mxu0 0.0
      %899 = vmatpush1.msra.mxu0 %v868
      %900 = vmatprep.subr.mxu0 0.0
      %901 = vmatpush1.msra.mxu0 %v869
      %902 = vmatprep.subr.mxu0 0.0
      %903 = vmatpush1.msra.mxu0 0.0
      %904 = vmatprep.subr.mxu0 0.0
      %905 = vmatpush1.msra.mxu0 0.0
      %906 = vmatprep.subr.mxu0 0.0
      %907 = vmatpush1.msra.mxu0 0.0
      %908 = vmatprep.subr.mxu0 0.0
      %909 = vmatpush1.msra.mxu0 0.0
      %910 = vmatprep.subr.mxu0 0.0
      %911 = vmatpush1.msra.mxu0 0.0
      %912 = vmatprep.subr.mxu0 0.0
      %913 = vmatpush1.msra.mxu0 0.0
      %914 = vmatprep.subr.mxu0 0.0
      %915 = vmatpush1.msra.mxu0 0.0
      %916 = vmatprep.subr.mxu0 0.0
      %917 = vmatpush1.msra.mxu0 0.0
      %918 = vmatprep.subr.mxu0 0.0
      %919 = vmatpush1.msra.mxu0 0.0
      %920 = vmatprep.subr.mxu0 0.0
      %921 = vmatpush1.msra.mxu0 0.0
      %922 = vmatprep.subr.mxu0 0.0
      %923 = vmatpush1.msra.mxu0 0.0
      %924 = vmatprep.subr.mxu0 0.0
      %925 = vmatpush1.msra.mxu0 0.0
      %926 = vmatprep.subr.mxu0 0.0
      %927 = vmatpush1.msra.mxu0 0.0
      %928 = vmatprep.subr.mxu0 0.0
      %929 = vmatpush1.msra.mxu0 0.0
      %930 = vmatprep.subr.mxu0 0.0
      %931 = vmatpush1.msra.mxu0 0.0
      %932 = vmatprep.subr.mxu0 0.0
      %933 = vmatpush1.msra.mxu0 0.0
      %934 = vmatprep.mubr.f32.mxu0 0.0
      %935 = vmatmul.mubr.f32.gmra.mrb[0].mxu0 %v851
      %v936 = vpop.f32.mrb[0].mxu0
      %v937 = vadd.f32 0.0, %v936
      %v938 = vpop.f32.mrb[0].mxu0
      %939 = vmatprep.mubr.f32.mxu0 0.0
      %940 = vmatmul.mubr.f32.gmra.mrb[0].mxu0 %v852
      %v941 = vpop.f32.mrb[0].mxu0
      %v942 = vadd.f32 0.0, %v941
      %v943 = vpop.f32.mrb[0].mxu0
      %944 = vdwg.mxu0
      %945 = vmatprep.subr.mxu0 0.0
      %946 = vmatpush1.msra.mxu0 %v835
      %947 = vmatprep.subr.mxu0 0.0
      %948 = vmatpush1.msra.mxu0 %v836
      %949 = vmatprep.subr.mxu0 0.0
      %950 = vmatpush1.msra.mxu0 %v837
      %951 = vmatprep.subr.mxu0 0.0
      %952 = vmatpush1.msra.mxu0 %v838
      %953 = vmatprep.subr.mxu0 0.0
      %954 = vmatpush1.msra.mxu0 %v839
      %955 = vmatprep.subr.mxu0 0.0
      %956 = vmatpush1.msra.mxu0 %v840
      %957 = vmatprep.subr.mxu0 0.0
      %958 = vmatpush1.msra.mxu0 %v841
      %959 = vmatprep.subr.mxu0 0.0
      %960 = vmatpush1.msra.mxu0 %v842
      %961 = vmatprep.subr.mxu0 0.0
      %962 = vmatpush1.msra.mxu0 %v843
      %963 = vmatprep.subr.mxu0 0.0
      %964 = vmatpush1.msra.mxu0 %v844
      %965 = vmatprep.subr.mxu0 0.0
      %966 = vmatpush1.msra.mxu0 %v845
      %967 = vmatprep.subr.mxu0 0.0
      %968 = vmatpush1.msra.mxu0 %v846
      %969 = vmatprep.subr.mxu0 0.0
      %970 = vmatpush1.msra.mxu0 %v847
      %971 = vmatprep.subr.mxu0 0.0
      %972 = vmatpush1.msra.mxu0 %v848
      %973 = vmatprep.subr.mxu0 0.0
      %974 = vmatpush1.msra.mxu0 %v849
      %975 = vmatprep.subr.mxu0 0.0
      %976 = vmatpush1.msra.mxu0 %v850
      %977 = vmatprep.subr.mxu0 0.0
      %978 = vmatpush1.msra.mxu0 0.0
      %979 = vmatprep.subr.mxu0 0.0
      %980 = vmatpush1.msra.mxu0 0.0
      %981 = vmatprep.subr.mxu0 0.0
      %982 = vmatpush1.msra.mxu0 0.0
      %983 = vmatprep.subr.mxu0 0.0
      %984 = vmatpush1.msra.mxu0 0.0
      %985 = vmatprep.subr.mxu0 0.0
      %986 = vmatpush1.msra.mxu0 0.0
      %987 = vmatprep.subr.mxu0 0.0
      %988 = vmatpush1.msra.mxu0 0.0
      %989 = vmatprep.subr.mxu0 0.0
      %990 = vmatpush1.msra.mxu0 0.0
      %991 = vmatprep.subr.mxu0 0.0
      %992 = vmatpush1.msra.mxu0 0.0
      %993 = vmatprep.subr.mxu0 0.0
      %994 = vmatpush1.msra.mxu0 0.0
      %995 = vmatprep.subr.mxu0 0.0
      %996 = vmatpush1.msra.mxu0 0.0
      %997 = vmatprep.subr.mxu0 0.0
      %998 = vmatpush1.msra.mxu0 0.0
      %999 = vmatprep.subr.mxu0 0.0
      %1000 = vmatpush1.msra.mxu0 0.0
      %1001 = vmatprep.subr.mxu0 0.0
      %1002 = vmatpush1.msra.mxu0 0.0
      %1003 = vmatprep.subr.mxu0 0.0
      %1004 = vmatpush1.msra.mxu0 0.0
      %1005 = vmatprep.subr.mxu0 0.0
      %1006 = vmatpush1.msra.mxu0 0.0
      %1007 = vmatprep.subr.mxu0 0.0
      %1008 = vmatpush1.msra.mxu0 0.0
      %1009 = vmatprep.mubr.f32.mxu0 0.0
      %1010 = vmatmul.mubr.f32.gmra.mrb[0].mxu0 %v832
      %v1011 = vpop.f32.mrb[0].mxu0
      %v1012 = vadd.f32 %v937, %v1011
      %v1013 = vpop.f32.mrb[0].mxu0
      %1014 = vmatprep.mubr.f32.mxu0 0.0
      %1015 = vmatmul.mubr.f32.gmra.mrb[0].mxu0 %v833
      %v1016 = vpop.f32.mrb[0].mxu0
      %v1017 = vadd.f32 %v942, %v1016
      %v1018 = vpop.f32.mrb[0].mxu0
      %1019 = vdwg.mxu0
      %v1020 = vld [vmem:[#allocation2 + $0x2] sm:$0xff]
      %v1021 = vld [vmem:[#allocation2 + $0xa] sm:$0xff]
      %s1022 = scalar_lea.vmem %s3, 1024
      %v1023 = vld [vmem:[%s1022] sm:$0xff]
      %v1024 = vld [vmem:[%s1022 + $0x8] sm:$0xff]
      %v1025 = vld [vmem:[%s1022 + $0x10] sm:$0xff]
      %v1026 = vld [vmem:[%s1022 + $0x18] sm:$0xff]
      %v1027 = vld [vmem:[%s1022 + $0x20] sm:$0xff]
      %v1028 = vld [vmem:[%s1022 + $0x28] sm:$0xff]
      %v1029 = vld [vmem:[%s1022 + $0x30] sm:$0xff]
      %v1030 = vld [vmem:[%s1022 + $0x38] sm:$0xff]
      %v1031 = vld [vmem:[%s1022 + $0x40] sm:$0xff]
      %v1032 = vld [vmem:[%s1022 + $0x48] sm:$0xff]
      %v1033 = vld [vmem:[%s1022 + $0x50] sm:$0xff]
      %v1034 = vld [vmem:[%s1022 + $0x58] sm:$0xff]
      %v1035 = vld [vmem:[%s1022 + $0x60] sm:$0xff]
      %v1036 = vld [vmem:[%s1022 + $0x68] sm:$0xff]
      %v1037 = vld [vmem:[%s1022 + $0x70] sm:$0xff]
      %v1038 = vld [vmem:[%s1022 + $0x78] sm:$0xff]
      %1039 = vmatprep.subr.mxu0 0.0
      %1040 = vmatpush1.msra.mxu0 %v1023
      %1041 = vmatprep.subr.mxu0 0.0
      %1042 = vmatpush1.msra.mxu0 %v1024
      %1043 = vmatprep.subr.mxu0 0.0
      %1044 = vmatpush1.msra.mxu0 %v1025
      %1045 = vmatprep.subr.mxu0 0.0
      %1046 = vmatpush1.msra.mxu0 %v1026
      %1047 = vmatprep.subr.mxu0 0.0
      %1048 = vmatpush1.msra.mxu0 %v1027
      %1049 = vmatprep.subr.mxu0 0.0
      %1050 = vmatpush1.msra.mxu0 %v1028
      %1051 = vmatprep.subr.mxu0 0.0
      %1052 = vmatpush1.msra.mxu0 %v1029
      %1053 = vmatprep.subr.mxu0 0.0
      %1054 = vmatpush1.msra.mxu0 %v1030
      %1055 = vmatprep.subr.mxu0 0.0
      %1056 = vmatpush1.msra.mxu0 %v1031
      %1057 = vmatprep.subr.mxu0 0.0
      %1058 = vmatpush1.msra.mxu0 %v1032
      %1059 = vmatprep.subr.mxu0 0.0
      %1060 = vmatpush1.msra.mxu0 %v1033
      %1061 = vmatprep.subr.mxu0 0.0
      %1062 = vmatpush1.msra.mxu0 %v1034
      %1063 = vmatprep.subr.mxu0 0.0
      %1064 = vmatpush1.msra.mxu0 %v1035
      %1065 = vmatprep.subr.mxu0 0.0
      %1066 = vmatpush1.msra.mxu0 %v1036
      %1067 = vmatprep.subr.mxu0 0.0
      %1068 = vmatpush1.msra.mxu0 %v1037
      %1069 = vmatprep.subr.mxu0 0.0
      %1070 = vmatpush1.msra.mxu0 %v1038
      %1071 = vmatprep.subr.mxu0 0.0
      %1072 = vmatpush1.msra.mxu0 0.0
      %1073 = vmatprep.subr.mxu0 0.0
      %1074 = vmatpush1.msra.mxu0 0.0
      %1075 = vmatprep.subr.mxu0 0.0
      %1076 = vmatpush1.msra.mxu0 0.0
      %1077 = vmatprep.subr.mxu0 0.0
      %1078 = vmatpush1.msra.mxu0 0.0
      %1079 = vmatprep.subr.mxu0 0.0
      %1080 = vmatpush1.msra.mxu0 0.0
      %1081 = vmatprep.subr.mxu0 0.0
      %1082 = vmatpush1.msra.mxu0 0.0
      %1083 = vmatprep.subr.mxu0 0.0
      %1084 = vmatpush1.msra.mxu0 0.0
      %1085 = vmatprep.subr.mxu0 0.0
      %1086 = vmatpush1.msra.mxu0 0.0
      %1087 = vmatprep.subr.mxu0 0.0
      %1088 = vmatpush1.msra.mxu0 0.0
      %1089 = vmatprep.subr.mxu0 0.0
      %1090 = vmatpush1.msra.mxu0 0.0
      %1091 = vmatprep.subr.mxu0 0.0
      %1092 = vmatpush1.msra.mxu0 0.0
      %1093 = vmatprep.subr.mxu0 0.0
      %1094 = vmatpush1.msra.mxu0 0.0
      %1095 = vmatprep.subr.mxu0 0.0
      %1096 = vmatpush1.msra.mxu0 0.0
      %1097 = vmatprep.subr.mxu0 0.0
      %1098 = vmatpush1.msra.mxu0 0.0
      %1099 = vmatprep.subr.mxu0 0.0
      %1100 = vmatpush1.msra.mxu0 0.0
      %1101 = vmatprep.subr.mxu0 0.0
      %1102 = vmatpush1.msra.mxu0 0.0
      %1103 = vmatprep.mubr.f32.mxu0 0.0
      %1104 = vmatmul.mubr.f32.gmra.mrb[0].mxu0 %v1020
      %v1105 = vpop.f32.mrb[0].mxu0
      %v1106 = vadd.f32 0.0, %v1105
      %v1107 = vpop.f32.mrb[0].mxu0
      %1108 = vmatprep.mubr.f32.mxu0 0.0
      %1109 = vmatmul.mubr.f32.gmra.mrb[0].mxu0 %v1021
      %v1110 = vpop.f32.mrb[0].mxu0
      %v1111 = vadd.f32 0.0, %v1110
      %v1112 = vpop.f32.mrb[0].mxu0
      %1113 = vdwg.mxu0
      %v1114 = vadd.f32 %v1012, %v1106
      %v1115 = vadd.f32 %v1017, %v1111
      %s1116 = scalar_lea.vmem %s4, 2
      %v1117 = vld [vmem:[%s1116] sm:$0x1]
      %v1119 = vlaneseq
      %v1120 = vshrl.u32 %v1119, 7
      %v1121 = vsub.s32 0, %v1120
      %v1122 = vrot.slane %v1117, %v1121
      %v1124 = vadd.f32 %v1114, %v1122
      %v1125 = vadd.f32 %v1115, %v1122
      %v1126 = vmax.f32 %v1124, 0.0
      %v1127 = vmax.f32 %v1125, 0.0
      %v1128 = vld [vmem:[%s226] sm:$0xff]
      %v1129 = vld [vmem:[%s226 + $0x8] sm:$0xff]
      %v1130 = vadd.f32 %v1128, %v1126
      %v1131 = vadd.f32 %v1129, %v1127
      %1132 = vst [vmem:[%s231] sm:$0xff] %v1130
      %1133 = vst [vmem:[%s231 + $0x8] sm:$0xff] %v1131
      %p1134 = scmp.lt.s32.totalorder %s22, 5
      %s1135 = scalar_select %p1134, %s22, 5
      %s1136 = smul.addr %s1135, 2
      %s1137 = smul.addr %s1136, 8
      %s1138 = scalar_lea.vmem %s5, %s1137
      // Predicated region
      $region37: #{persistent_memory_forward.1} parent=35 // pred_check
        %p1139 = pneg %p136
      $region38: #{persistent_memory_forward.1} parent=35 // pred_check_branch
        %1141 = sbr.rel (%p1139) target = $region40
      $region39: #{persistent_memory_forward.1} parent=35 // pred_region
        _
      $region40: #{persistent_memory_forward.1} parent=35 // pred_fallthru
        _
    $region36: #{persistent_memory_forward.1} parent=5 // pred_fallthru
      _
    %p1142 = scmp.le.s32.totalorder 2, %s17
    // Predicated region
    $region41: #{persistent_memory_forward.1} parent=5 // pred_check
      %p1143 = pneg %p1142
    $region42: #{persistent_memory_forward.1} parent=5 // pred_check_branch
      %1145 = sbr.rel (%p1143) target = $region44
    $region43: #{persistent_memory_forward.1} parent=5 // pred_region
      %s1146 = ssub.s32 %s17, 2
      // Predicated region
      $region45: #{persistent_memory_forward.1} parent=43 // pred_check
        %p1147 = pneg %p142
      $region46: #{persistent_memory_forward.1} parent=43 // pred_check_branch
        %1149 = sbr.rel (%p1147) target = $region48
      $region47: #{persistent_memory_forward.1} parent=43 // pred_region
        %p1150 = scmp.lt.s32.totalorder %s23, 5
        %s1151 = scalar_select %p1150, %s23, 5
        %s1152 = smul.addr %s1151, 2
        %s1153 = smul.addr %s1152, 8
        %s1154 = scalar_lea.vmem %s5, %s1153
      $region48: #{persistent_memory_forward.1} parent=43 // pred_fallthru
        _
    $region44: #{persistent_memory_forward.1} parent=5 // pred_fallthru
      _
  $region6: #{persistent_memory_forward.1} parent=0 // loop_footer
    %s21 = sadd.s32 1, %s17
  $region7: #{persistent_memory_forward.1} parent=0 // loop_footer_branch
    %16 = sbr.rel target = $region3
  $region8: #{persistent_memory_forward.1} parent=0 // loop_exit
    _

</llo_original>
